<compile_context>
chip_gen: v7x
topology: tpu7x:2x2x1
jax: 0.10.0
libtpu: 0.0.40
codegen_flags: <defaults>
</compile_context>

<pallas_src>
import functools

import jax
import jax.numpy as jnp
from jax.experimental import pallas as pl
from jax.experimental.pallas import tpu as pltpu


_VMEM_BUDGET = 36 * 1024 * 1024   # target double-buffered tile footprint
_VMEM_LIMIT = 48 * 1024 * 1024    # scoped-VMEM limit (safe on v5e/v6e/v7x)


def _round_up(x: int, m: int) -> int:
    return ((x + m - 1) // m) * m


def _sublane_align(dtype) -> int:
    """Row alignment that keeps blocks packed / stores unmasked for dtype."""
    itemsize = jnp.dtype(dtype).itemsize
    if itemsize >= 4:
        return 8
    if itemsize == 2:
        return 16
    return 32


def _footprint(tm, tn, tk, cbytes, obytes, with_acc):
    f = 2 * tm * tk * cbytes          # x tiles (double-buffered)
    f += 2 * tk * tn * cbytes         # weight tiles (double-buffered)
    f += 2 * tm * tn * obytes         # output tiles (double-buffered)
    if with_acc:
        f += tm * tn * 4              # f32 accumulator scratch
    return f


def _choose_tiles(M, N, K, cbytes, obytes, m_align):
    """Pick (tm, tn, tk) maximizing arithmetic intensity within _VMEM_BUDGET."""
    Kp = _round_up(K, 128)
    Np = _round_up(N, 128)
    Mp = _round_up(M, m_align)

    def clamp_tm(t):
        return max(m_align, min(_round_up(t, m_align), Mp))

    def clamp_tn(t):
        return max(128, min(_round_up(t, 128), Np))

    # Path A: tk == Kp -> single K step, no accumulator. Prefer tn == Np
    # (weight fully VMEM-resident, DMA'd once), then large square tiles.
    for tn_c in (Np, 1024, 512, 256, 128):
        tn = clamp_tn(tn_c)
        for tm_c in (1024, 768, 512, 256):
            tm = clamp_tm(tm_c)
            if _footprint(tm, tn, Kp, cbytes, obytes, False) <= _VMEM_BUDGET:
                return tm, tn, Kp

    # Path B: split K (innermost grid axis), f32 accumulator in VMEM scratch.
    for tm_c, tn_c in ((1024, 1024), (1024, 512), (512, 512), (256, 256), (128, 128)):
        tm, tn = clamp_tm(tm_c), clamp_tn(tn_c)
        for tk_c in (2048, 1024, 512, 256, 128):
            tk = max(128, min(tk_c, Kp))
            if _footprint(tm, tn, tk, cbytes, obytes, True) <= _VMEM_BUDGET:
                return tm, tn, tk

    # Conservative fallback.
    return clamp_tm(128), clamp_tn(128), 128


def _key_matmul_noacc_kernel(x_ref, w_ref, o_ref):
    # x: [tm, Kp], w: [Kp, tn] (pre-transposed in the wrapper) -> o: [tm, tn]
    o_ref[...] = jnp.dot(
        x_ref[...], w_ref[...], preferred_element_type=jnp.float32
    ).astype(o_ref.dtype)


def _key_matmul_acc_kernel(x_ref, w_ref, o_ref, acc_ref):
    # x: [tm, tk], w: [tk, tn], f32 accumulator across the K grid axis.
    @pl.when(pl.program_id(2) == 0)
    def _():
        acc_ref[...] = jnp.zeros_like(acc_ref)

    acc_ref[...] += jnp.dot(
        x_ref[...], w_ref[...], preferred_element_type=jnp.float32
    )

    @pl.when(pl.program_id(2) == pl.num_programs(2) - 1)
    def _():
        o_ref[...] = acc_ref[...].astype(o_ref.dtype)


@functools.partial(jax.jit, static_argnames=("compute_dtype", "tm", "tn", "tk"))
def key_forward(x, weight, *, compute_dtype=jnp.bfloat16, tm=None, tn=None, tk=None):
    """Pallas equivalent of Key.forward: x @ weight.T (no bias).

    x:      [B, S, dim_input]
    weight: [dim_attn, dim_input]   (PyTorch nn.Linear layout, NOT transposed)
    returns [B, S, dim_attn] in x.dtype
    """
    B, S, D_in = x.shape
    dim_attn, d_in_w = weight.shape
    assert d_in_w == D_in, "weight shape mismatch"

    M, N, K = B * S, dim_attn, D_in
    out_dtype = x.dtype
    cbytes = jnp.dtype(compute_dtype).itemsize
    obytes = jnp.dtype(out_dtype).itemsize
    m_align = max(_sublane_align(out_dtype), _sublane_align(compute_dtype))

    auto_tm = tm is None
    a_tm, a_tn, a_tk = _choose_tiles(M, N, K, cbytes, obytes, m_align)
    tm = tm or a_tm
    tn = tn or a_tn
    tk = tk or a_tk

    Mp, Np, Kp = _round_up(M, tm), _round_up(N, tn), _round_up(K, tk)

    # v7x megacore: keep >= 2 blocks on a "parallel" axis when the shape allows.
    if auto_tm and (Mp // tm) == 1 and (Np // tn) == 1:
        tm_half = _round_up(max(m_align, (M + 1) // 2), m_align)
        if tm_half < tm:
            tm = tm_half
            Mp = _round_up(M, tm)

    grid_k = Kp // tk
    use_acc = grid_k > 1

    # Activations: cast / pad only when actually needed.
    x2d = x.reshape(M, K)
    if x2d.dtype != compute_dtype:
        x2d = x2d.astype(compute_dtype)
    if (Mp, Kp) != (M, K):
        x2d = jnp.pad(x2d, ((0, Mp - M), (0, Kp - K)))

    # Weight: one-time wrapper transpose to MXU-native [K, N]; amortized over
    # the Mp/tm re-streams and removes any in-kernel transpose work.
    w = weight
    if w.dtype != compute_dtype:
        w = w.astype(compute_dtype)
    w = w.T
    if (Kp, Np) != (K, N):
        w = jnp.pad(w, ((0, Kp - K), (0, Np - N)))

    if not use_acc:
        # Full-K tiles: no accumulator; weight resident when Np // tn == 1.
        out_padded = pl.pallas_call(
            _key_matmul_noacc_kernel,
            out_shape=jax.ShapeDtypeStruct((Mp, Np), out_dtype),
            grid_spec=pltpu.PrefetchScalarGridSpec(
                num_scalar_prefetch=0,
                grid=(Mp // tm, Np // tn),
                in_specs=[
                    pl.BlockSpec((tm, tk), lambda i, j: (i, 0)),   # x tile
                    pl.BlockSpec((tk, tn), lambda i, j: (0, j)),   # weight tile
                ],
                out_specs=pl.BlockSpec((tm, tn), lambda i, j: (i, j)),
            ),
            compiler_params=pltpu.CompilerParams(
                dimension_semantics=("parallel", "parallel"),
                vmem_limit_bytes=_VMEM_LIMIT,
            ),
        )(x2d, w)
    else:
        out_padded = pl.pallas_call(
            _key_matmul_acc_kernel,
            out_shape=jax.ShapeDtypeStruct((Mp, Np), out_dtype),
            grid_spec=pltpu.PrefetchScalarGridSpec(
                num_scalar_prefetch=0,
                grid=(Mp // tm, Np // tn, grid_k),
                in_specs=[
                    pl.BlockSpec((tm, tk), lambda i, j, k: (i, k)),  # x tile
                    pl.BlockSpec((tk, tn), lambda i, j, k: (k, j)),  # weight tile
                ],
                out_specs=pl.BlockSpec((tm, tn), lambda i, j, k: (i, j)),
                scratch_shapes=[pltpu.VMEM((tm, tn), jnp.float32)],
            ),
            compiler_params=pltpu.CompilerParams(
                dimension_semantics=("parallel", "parallel", "arbitrary"),
                vmem_limit_bytes=_VMEM_LIMIT,
            ),
        )(x2d, w)

    out = out_padded
    if (Mp, Np) != (M, N):
        out = out[:M, :N]
    return out.reshape(B, S, N)


if __name__ == "__main__":
    # Small shapes consistent with an attention Key projection.
    B, S, dim_input, dim_attn = 2, 8, 32, 32

    key = jax.random.PRNGKey(0)
    kx, kw = jax.random.split(key)

    x = jax.random.normal(kx, (B, S, dim_input), dtype=jnp.float32)
    # nn.Linear-style uniform(-1/sqrt(fan_in), 1/sqrt(fan_in)) init for fc1.weight.
    bound = 1.0 / (dim_input ** 0.5)
    weight = jax.random.uniform(
        kw, (dim_attn, dim_input), dtype=jnp.float32, minval=-bound, maxval=bound
    )

    # Default (bf16-fed MXU, f32 accumulate) path — weight-resident, no-acc kernel.
    out_bf16 = key_forward(x, weight)
    jax.block_until_ready(out_bf16)
    assert out_bf16.shape == (B, S, dim_attn)

    ref_bf16 = jnp.einsum(
        "bsd,ad->bsa",
        x.astype(jnp.bfloat16).astype(jnp.float32),
        weight.astype(jnp.bfloat16).astype(jnp.float32),
    )
    assert jnp.allclose(out_bf16, ref_bf16, atol=1e-3, rtol=1e-3)

    # Full-f32 compute path must match the PyTorch-equivalent reference tightly.
    out_f32 = key_forward(x, weight, compute_dtype=jnp.float32)
    jax.block_until_ready(out_f32)
    ref_f32 = jnp.einsum("bsd,ad->bsa", x, weight)
    assert jnp.allclose(out_f32, ref_f32, atol=1e-5, rtol=1e-5)

    # Exercise the K-split accumulator path with a slightly larger K and
    # explicit small tiles (grid_k = 2).
    dim_input2, dim_attn2 = 256, 128
    kx2, kw2 = jax.random.split(jax.random.PRNGKey(1))
    x2 = jax.random.normal(kx2, (B, S, dim_input2), dtype=jnp.float32)
    bound2 = 1.0 / (dim_input2 ** 0.5)
    weight2 = jax.random.uniform(
        kw2, (dim_attn2, dim_input2), dtype=jnp.float32, minval=-bound2, maxval=bound2
    )
    out_split = key_forward(
        x2, weight2, compute_dtype=jnp.float32, tm=16, tn=128, tk=128
    )
    jax.block_until_ready(out_split)
    ref_split = jnp.einsum("bsd,ad->bsa", x2, weight2)
    assert jnp.allclose(out_split, ref_split, atol=1e-4, rtol=1e-4)

    print("KERNEL_OK")
</pallas_src>

<mosaic_0001>
module attributes {stable_mosaic.version = 11 : i64} {
  func.func @_key_matmul_noacc_kernel(%arg0: i32, %arg1: i32, %arg2: memref<16x128xbf16, #tpu.memory_space<vmem>>, %arg3: memref<128x128xbf16, #tpu.memory_space<vmem>>, %arg4: memref<16x128xf32, #tpu.memory_space<vmem>>) attributes {dimension_semantics = [#tpu.dimension_semantics<parallel>, #tpu.dimension_semantics<parallel>], iteration_bounds = array<i64: 1, 1>, scalar_prefetch = 0 : i64, scratch_operands = 0 : i64, tpu.core_type = #tpu.core_type<tc>, window_params = [{transform_indices = @transform_0, window_bounds = array<i64: 16, 128>}, {transform_indices = @transform_1, window_bounds = array<i64: 128, 128>}, {transform_indices = @transform_2, window_bounds = array<i64: 16, 128>}]} {
    %c0 = arith.constant 0 : index
    %c0_0 = arith.constant 0 : index
    %0 = vector.load %arg2[%c0, %c0_0] : memref<16x128xbf16, #tpu.memory_space<vmem>>, vector<16x128xbf16>
    %c0_1 = arith.constant 0 : index
    %c0_2 = arith.constant 0 : index
    %1 = vector.load %arg3[%c0_1, %c0_2] : memref<128x128xbf16, #tpu.memory_space<vmem>>, vector<128x128xbf16>
    %cst = arith.constant dense<0.000000e+00> : vector<16x128xf32>
    %2 = tpu.matmul %0, %1, %cst {dimension_numbers = #tpu.dot_dimension_numbers<[1], [0], [0], [1], [0, 0, 1, 1], [], []>} : vector<16x128xbf16>, vector<128x128xbf16>, vector<16x128xf32> -> vector<16x128xf32>
    %c0_3 = arith.constant 0 : index
    %c0_4 = arith.constant 0 : index
    %3 = vector.load %arg4[%c0_3, %c0_4] : memref<16x128xf32, #tpu.memory_space<vmem>>, vector<16x128xf32>
    tpu.vector_store %arg4[%c0_3, %c0_4], %2 {strides = array<i32>} : memref<16x128xf32, #tpu.memory_space<vmem>>, vector<16x128xf32>,
    return
  }
  func.func @transform_0(%arg0: i32, %arg1: i32) -> (i32, i32) {
    %c0_i32 = arith.constant 0 : i32
    %c0_i32_0 = arith.constant 0 : i32
    return %arg0, %c0_i32 : i32, i32
  }
  func.func @transform_1(%arg0: i32, %arg1: i32) -> (i32, i32) {
    %c0_i32 = arith.constant 0 : i32
    %c0_i32_0 = arith.constant 0 : i32
    return %c0_i32, %arg1 : i32, i32
  }
  func.func @transform_2(%arg0: i32, %arg1: i32) -> (i32, i32) {
    %c0_i32 = arith.constant 0 : i32
    return %arg0, %arg1 : i32, i32
  }
}

</mosaic_0001>

<llo_original>
// kernel: key_forward.1
$region0: #{key_forward.1}
  #allocation0 [shape = 'u32[]', space=smem, size = 0x4, offset = 0x4, fixed_abs, tag = 'smem constant byte address 0x4 - core index']
  #allocation1 [shape = 'u32[144,128]{1,0:T(1,128)}', space=vmem, size = 0x12000, scoped, tag = 'internal scratch']
  %s0 = inlined_call_operand.vmem [shape: bf16[16,128], index: 0, kind: input, shape index: {}]
  %s1 = inlined_call_operand.vmem [shape: bf16[128,128], index: 1, kind: input, shape index: {}]
  %s2 = inlined_call_operand.vmem [shape: f32[16,128], index: 2, kind: output, shape index: {}]
  %s3 = sld [smem:[#allocation0]]
  $region18: #{key_forward.1} parent=0
    _
  %s5 = ssub.s32 1, %s3
  %s6 = scalar_select 0, %s5, %s3
  // Predicated region
  $region2: #{key_forward.1} parent=0 // pred_check
    _
  $region3: #{key_forward.1} parent=0 // pred_check_branch
    %8 = sbr.rel (0) target = $region5
  $region4: #{key_forward.1} parent=0 // pred_region
    _
  $region5: #{key_forward.1} parent=0 // pred_fallthru
    _
  // Predicated region
  $region6: #{key_forward.1} parent=0 // pred_check
    _
  $region7: #{key_forward.1} parent=0 // pred_check_branch
    %10 = sbr.rel (0) target = $region9
  $region8: #{key_forward.1} parent=0 // pred_region
    _
  $region9: #{key_forward.1} parent=0 // pred_fallthru
    _
  %v12 = vld [vmem:[%s0] sm:$0xf]
  %v13 = vld [vmem:[%s0 + $0x4] sm:$0xf]
  %v14 = vld [vmem:[%s1] sm:$0xf]
  %v15 = vld [vmem:[%s1 + $0x4] sm:$0xf]
  %v16 = vld [vmem:[%s1 + $0x8] sm:$0xf]
  %v17 = vld [vmem:[%s1 + $0xc] sm:$0xf]
  %v18 = vld [vmem:[%s1 + $0x10] sm:$0xf]
  %v19 = vld [vmem:[%s1 + $0x14] sm:$0xf]
  %v20 = vld [vmem:[%s1 + $0x18] sm:$0xf]
  %v21 = vld [vmem:[%s1 + $0x1c] sm:$0xf]
  %v22 = vld [vmem:[%s1 + $0x20] sm:$0xf]
  %v23 = vld [vmem:[%s1 + $0x24] sm:$0xf]
  %v24 = vld [vmem:[%s1 + $0x28] sm:$0xf]
  %v25 = vld [vmem:[%s1 + $0x2c] sm:$0xf]
  %v26 = vld [vmem:[%s1 + $0x30] sm:$0xf]
  %v27 = vld [vmem:[%s1 + $0x34] sm:$0xf]
  %v28 = vld [vmem:[%s1 + $0x38] sm:$0xf]
  %v29 = vld [vmem:[%s1 + $0x3c] sm:$0xf]
  %v32 = vunpack.c.l.b16 %v12
  %v33 = vunpack.c.l.b16 %v13
  %v34 = vpack.c.b16 %v33, %v32
  %v52 = vunpack.c.l.b16 %v14
  %v53 = vunpack.c.l.b16 %v15
  %v54 = vunpack.c.l.b16 %v16
  %v55 = vunpack.c.l.b16 %v17
  %v56 = vunpack.c.l.b16 %v18
  %v57 = vunpack.c.l.b16 %v19
  %v58 = vunpack.c.l.b16 %v20
  %v59 = vunpack.c.l.b16 %v21
  %v60 = vunpack.c.l.b16 %v22
  %v61 = vunpack.c.l.b16 %v23
  %v62 = vunpack.c.l.b16 %v24
  %v63 = vunpack.c.l.b16 %v25
  %v64 = vunpack.c.l.b16 %v26
  %v65 = vunpack.c.l.b16 %v27
  %v66 = vunpack.c.l.b16 %v28
  %v67 = vunpack.c.l.b16 %v29
  %v68 = vpack.c.b16 %v53, %v52
  %v69 = vpack.c.b16 %v55, %v54
  %v70 = vpack.c.b16 %v57, %v56
  %v71 = vpack.c.b16 %v59, %v58
  %v72 = vpack.c.b16 %v61, %v60
  %v73 = vpack.c.b16 %v63, %v62
  %v74 = vpack.c.b16 %v65, %v64
  %v75 = vpack.c.b16 %v67, %v66
  %84 = vmatprep.subr.bf16.mxu0 0
  %85 = vmatpush1.bf16.msra.mxu0 %v68
  %86 = vmatprep.subr.bf16.mxu0 0
  %87 = vmatpush1.bf16.msra.mxu0 %v69
  %88 = vmatprep.subr.bf16.mxu0 0
  %89 = vmatpush1.bf16.msra.mxu0 %v70
  %90 = vmatprep.subr.bf16.mxu0 0
  %91 = vmatpush1.bf16.msra.mxu0 %v71
  %92 = vmatprep.subr.bf16.mxu0 0
  %93 = vmatpush1.bf16.msra.mxu0 %v72
  %94 = vmatprep.subr.bf16.mxu0 0
  %95 = vmatpush1.bf16.msra.mxu0 %v73
  %96 = vmatprep.subr.bf16.mxu0 0
  %97 = vmatpush1.bf16.msra.mxu0 %v74
  %98 = vmatprep.subr.bf16.mxu0 0
  %99 = vmatpush1.bf16.msra.mxu0 %v75
  %100 = vmatprep.subr.bf16.mxu0 0
  %101 = vmatpush1.bf16.msra.mxu0 0
  %102 = vmatprep.subr.bf16.mxu0 0
  %103 = vmatpush1.bf16.msra.mxu0 0
  %104 = vmatprep.subr.bf16.mxu0 0
  %105 = vmatpush1.bf16.msra.mxu0 0
  %106 = vmatprep.subr.bf16.mxu0 0
  %107 = vmatpush1.bf16.msra.mxu0 0
  %108 = vmatprep.subr.bf16.mxu0 0
  %109 = vmatpush1.bf16.msra.mxu0 0
  %110 = vmatprep.subr.bf16.mxu0 0
  %111 = vmatpush1.bf16.msra.mxu0 0
  %112 = vmatprep.subr.bf16.mxu0 0
  %113 = vmatpush1.bf16.msra.mxu0 0
  %114 = vmatprep.subr.bf16.mxu0 0
  %115 = vmatpush1.bf16.msra.mxu0 0
  %116 = vmatprep.mubr.bf16.mxu0 0
  %117 = vmatmul.mubr.bf16.gmra.mrb[0].mxu0 %v34
  %v118 = vpop.f32.mrb[0].mxu0
  %v119 = vadd.f32 0.0, %v118
  %v120 = vpop.f32.mrb[0].mxu0
  %v121 = vpop.f32.mrb[0].mxu0
  %v122 = vadd.f32 0.0, %v121
  %v123 = vpop.f32.mrb[0].mxu0
  %124 = vdwg.mxu0
  %125 = vst [vmem:[%s2] sm:$0xff] %v119
  %126 = vst [vmem:[%s2 + $0x8] sm:$0xff] %v122
  // Predicated region
  $region10: #{key_forward.1} parent=0 // pred_check
    _
  $region11: #{key_forward.1} parent=0 // pred_check_branch
    %128 = sbr.rel (0) target = $region13
  $region12: #{key_forward.1} parent=0 // pred_region
    _
  $region13: #{key_forward.1} parent=0 // pred_fallthru
    _
  // Predicated region
  $region14: #{key_forward.1} parent=0 // pred_check
    _
  $region15: #{key_forward.1} parent=0 // pred_check_branch
    %130 = sbr.rel (0) target = $region17
  $region16: #{key_forward.1} parent=0 // pred_region
    _
  $region17: #{key_forward.1} parent=0 // pred_fallthru
    _

</llo_original>
